<compile_context>
chip_gen: v6e
topology: v6e:2x2x1
jax: 0.10.0
libtpu: 0.0.40
codegen_flags: <defaults>
</compile_context>

<pallas_src>
import math

import jax
import jax.numpy as jnp
from jax.experimental import pallas as pl
from jax.experimental.pallas import tpu as pltpu

LANE = 128          # every layer's output width is zero-padded to this
TILE_B_MAX = 256    # 2 sub-chains of 128 rows: two (128,128) f32 accumulators
                    # (2 x 16 vregs) + bf16 activation copies fit the vreg file


def _round_up(x, m):
    return (x + m - 1) // m * m


def _pick_tile_b(B):
    """Batch tile size.

    Multiple of 16 (bf16 sublane packing), capped at TILE_B_MAX, and chosen so
    the batch grid has >= 2 steps whenever the batch allows it (so the
    "parallel" grid axis can be sharded across both v7x TensorCores).
    """
    b16 = _round_up(max(B, 1), 16)
    tile = _round_up(pl.cdiv(b16, 2), 16)
    return max(16, min(TILE_B_MAX, tile))


def dqn_kernel(x_ref,
               w1_ref, b1_ref,
               w2_ref, b2_ref,
               w3_ref, b3_ref,
               w4_ref, b4_ref,
               w5_ref, b5_ref,
               out_ref):
    """Fused 5-layer MLP on one batch tile, processed as two independent
    sub-chains of tile_b/2 rows so the MXU and VPU epilogues of the two chains
    overlap. bf16 matmul operands, f32 accumulate, bias add + ReLU in f32."""
    w_refs = (w1_ref, w2_ref, w3_ref, w4_ref, w5_ref)
    b_refs = (b1_ref, b2_ref, b3_ref, b4_ref, b5_ref)
    n_layers = len(w_refs)

    half = x_ref.shape[0] // 2          # static; tile_b is always a multiple of 16
    ha = x_ref[:half, :]                # already bf16 (cast in the wrapper)
    hb = x_ref[half:, :]

    for i in range(n_layers):
        w = w_refs[i][...]
        b = b_refs[i][...]
        # Two independent chains per layer: dot / +bias / ReLU / bf16-cast of
        # chain A can overlap with the MXU pushes of chain B (and vice versa).
        ya = jnp.dot(ha, w, preferred_element_type=jnp.float32) + b
        yb = jnp.dot(hb, w, preferred_element_type=jnp.float32) + b
        if i < n_layers - 1:
            ha = jnp.maximum(ya, 0.0).astype(jnp.bfloat16)
            hb = jnp.maximum(yb, 0.0).astype(jnp.bfloat16)
        else:
            out_ref[:half, :] = ya.astype(out_ref.dtype)
            out_ref[half:, :] = yb.astype(out_ref.dtype)


def dqn_forward(x, params, act_dim):
    """x: (B, obs_dim) f32 (or bf16).
    params: list of (W, b) with W bf16 (in[_pad], 128), b f32 (1, 128);
    all hidden/output widths are zero-padded to LANE columns.
    Returns (B, act_dim) f32 Q-values."""
    B, obs_dim = x.shape
    out_pad = params[-1][0].shape[1]    # lane-padded output width (128)

    tile_b = _pick_tile_b(B)
    b_pad = _round_up(B, tile_b)
    if b_pad != B:
        x = jnp.pad(x, ((0, b_pad - B), (0, 0)))
    x = x.astype(jnp.bfloat16)          # halve x DMA bytes; weights are bf16 anyway

    grid = (b_pad // tile_b,)

    in_specs = [pl.BlockSpec((tile_b, obs_dim), lambda i: (i, 0))]
    flat_args = [x]
    for w, b in params:
        # Full-array blocks with constant index_map -> same block every grid
        # step, so Pallas keeps weights/biases VMEM-resident (one DMA per call).
        in_specs.append(pl.BlockSpec(w.shape, lambda i: (0, 0)))
        in_specs.append(pl.BlockSpec(b.shape, lambda i: (0, 0)))
        flat_args.extend([w, b])

    flops = 2 * b_pad * sum(w.shape[0] * w.shape[1] for w, _ in params)
    bytes_accessed = (x.size * 2 + b_pad * out_pad * 4
                      + sum(w.size * 2 + b.size * 4 for w, b in params))

    out = pl.pallas_call(
        dqn_kernel,
        out_shape=jax.ShapeDtypeStruct((b_pad, out_pad), jnp.float32),
        grid=grid,
        in_specs=in_specs,
        out_specs=pl.BlockSpec((tile_b, out_pad), lambda i: (i, 0)),
        compiler_params=pltpu.CompilerParams(
            dimension_semantics=("parallel",)),
        cost_estimate=pl.CostEstimate(
            flops=flops, transcendentals=0, bytes_accessed=bytes_accessed),
    )(*flat_args)

    return out[:B, :act_dim]


def init_linear(key, in_dim, out_dim, in_pad=None, out_pad=None):
    """PyTorch nn.Linear-style init (uniform +/- 1/sqrt(in)), stored as (in, out)
    so y = x @ W + b. Weights cast to bf16 (MXU operands); bias kept f32.
    Zero-pads the input dim to `in_pad` rows and the output dim to `out_pad`
    lanes (padding is zeros, so the math on the real lanes is unchanged)."""
    kw, kb = jax.random.split(key)
    bound = 1.0 / math.sqrt(in_dim)
    w = jax.random.uniform(kw, (in_dim, out_dim), jnp.float32, -bound, bound)
    b = jax.random.uniform(kb, (1, out_dim), jnp.float32, -bound, bound)
    in_pad = in_pad if in_pad is not None else in_dim
    out_pad = out_pad if out_pad is not None else out_dim
    w = jnp.pad(w, ((0, in_pad - in_dim), (0, out_pad - out_dim)))
    b = jnp.pad(b, ((0, 0), (0, out_pad - out_dim)))
    return w.astype(jnp.bfloat16), b


def make_params(key, obs_dim, act_dim):
    """obs_dim -> 64 -> 128 -> 128 -> 64 -> act_dim, all widths lane-padded to 128."""
    raw_dims = [(obs_dim, 64), (64, 128), (128, 128), (128, 64), (64, act_dim)]
    keys = jax.random.split(key, len(raw_dims))
    params = []
    for i, (din, dout) in enumerate(raw_dims):
        in_pad = din if i == 0 else LANE   # layer-0 input keeps obs_dim
        params.append(init_linear(keys[i], din, dout, in_pad=in_pad, out_pad=LANE))
    return params


def reference_forward(x, params, act_dim):
    """Pure-JAX f32 reference on the same (zero-padded, bf16) weights."""
    h = x.astype(jnp.float32)
    for i, (w, b) in enumerate(params):
        h = h @ w.astype(jnp.float32) + b
        if i < len(params) - 1:
            h = jnp.maximum(h, 0.0)
    return h[:, :act_dim]


if __name__ == "__main__":
    obs_dim, act_dim = 16, 8
    batch = 8

    key = jax.random.PRNGKey(0)
    k_params, k_x = jax.random.split(key)
    params = make_params(k_params, obs_dim, act_dim)

    x = jax.random.normal(k_x, (batch, obs_dim), dtype=jnp.float32)
    out = jax.block_until_ready(dqn_forward(x, params, act_dim))
    ref = reference_forward(x, params, act_dim)
    assert out.shape == (batch, act_dim)
    assert jnp.allclose(out, ref, atol=2e-2, rtol=2e-2), "mismatch vs reference"

    # Batch-padding / slicing path (B not a multiple of the tile size).
    x2 = jax.random.normal(jax.random.PRNGKey(1), (5, obs_dim), dtype=jnp.float32)
    out2 = jax.block_until_ready(dqn_forward(x2, params, act_dim))
    ref2 = reference_forward(x2, params, act_dim)
    assert out2.shape == (5, act_dim)
    assert jnp.allclose(out2, ref2, atol=2e-2, rtol=2e-2), "mismatch (padded batch)"

    # Multi-step grid path (>= 2 parallel grid steps, exercises megacore split).
    x3 = jax.random.normal(jax.random.PRNGKey(2), (40, obs_dim), dtype=jnp.float32)
    out3 = jax.block_until_ready(dqn_forward(x3, params, act_dim))
    ref3 = reference_forward(x3, params, act_dim)
    assert out3.shape == (40, act_dim)
    assert jnp.allclose(out3, ref3, atol=2e-2, rtol=2e-2), "mismatch (multi-tile batch)"

    print("KERNEL_OK")
</pallas_src>

<mosaic_0001>
module attributes {stable_mosaic.version = 11 : i64} {
  func.func @dqn_kernel(%arg0: i32, %arg1: memref<16x16xbf16, #tpu.memory_space<vmem>>, %arg2: memref<16x128xbf16, #tpu.memory_space<vmem>>, %arg3: memref<1x128xf32, #tpu.memory_space<vmem>>, %arg4: memref<128x128xbf16, #tpu.memory_space<vmem>>, %arg5: memref<1x128xf32, #tpu.memory_space<vmem>>, %arg6: memref<128x128xbf16, #tpu.memory_space<vmem>>, %arg7: memref<1x128xf32, #tpu.memory_space<vmem>>, %arg8: memref<128x128xbf16, #tpu.memory_space<vmem>>, %arg9: memref<1x128xf32, #tpu.memory_space<vmem>>, %arg10: memref<128x128xbf16, #tpu.memory_space<vmem>>, %arg11: memref<1x128xf32, #tpu.memory_space<vmem>>, %arg12: memref<16x128xf32, #tpu.memory_space<vmem>>) attributes {dimension_semantics = [#tpu.dimension_semantics<parallel>], iteration_bounds = array<i64: 1>, scalar_prefetch = 0 : i64, scratch_operands = 0 : i64, tpu.core_type = #tpu.core_type<tc>, window_params = [{transform_indices = @transform_0, window_bounds = array<i64: 16, 16>}, {pipeline_mode = #tpu.pipeline_mode<synchronous>, transform_indices = @transform_1, window_bounds = array<i64: 16, 128>}, {pipeline_mode = #tpu.pipeline_mode<synchronous>, transform_indices = @transform_2, window_bounds = array<i64: 1, 128>}, {pipeline_mode = #tpu.pipeline_mode<synchronous>, transform_indices = @transform_3, window_bounds = array<i64: 128, 128>}, {pipeline_mode = #tpu.pipeline_mode<synchronous>, transform_indices = @transform_4, window_bounds = array<i64: 1, 128>}, {pipeline_mode = #tpu.pipeline_mode<synchronous>, transform_indices = @transform_5, window_bounds = array<i64: 128, 128>}, {pipeline_mode = #tpu.pipeline_mode<synchronous>, transform_indices = @transform_6, window_bounds = array<i64: 1, 128>}, {pipeline_mode = #tpu.pipeline_mode<synchronous>, transform_indices = @transform_7, window_bounds = array<i64: 128, 128>}, {pipeline_mode = #tpu.pipeline_mode<synchronous>, transform_indices = @transform_8, window_bounds = array<i64: 1, 128>}, {pipeline_mode = #tpu.pipeline_mode<synchronous>, transform_indices = @transform_9, window_bounds = array<i64: 128, 128>}, {pipeline_mode = #tpu.pipeline_mode<synchronous>, transform_indices = @transform_10, window_bounds = array<i64: 1, 128>}, {transform_indices = @transform_11, window_bounds = array<i64: 16, 128>}]} {
    %c0 = arith.constant 0 : index
    %c0_0 = arith.constant 0 : index
    %0 = vector.load %arg1[%c0, %c0_0] : memref<16x16xbf16, #tpu.memory_space<vmem>>, vector<8x16xbf16>
    %c8 = arith.constant 8 : index
    %c0_1 = arith.constant 0 : index
    %1 = vector.load %arg1[%c8, %c0_1] : memref<16x16xbf16, #tpu.memory_space<vmem>>, vector<8x16xbf16>
    %c0_2 = arith.constant 0 : index
    %c0_3 = arith.constant 0 : index
    %2 = vector.load %arg2[%c0_2, %c0_3] : memref<16x128xbf16, #tpu.memory_space<vmem>>, vector<16x128xbf16>
    %c0_4 = arith.constant 0 : index
    %c0_5 = arith.constant 0 : index
    %3 = vector.load %arg3[%c0_4, %c0_5] : memref<1x128xf32, #tpu.memory_space<vmem>>, vector<1x128xf32>
    %cst = arith.constant dense<0.000000e+00> : vector<8x128xf32>
    %4 = tpu.matmul %0, %2, %cst {dimension_numbers = #tpu.dot_dimension_numbers<[1], [0], [0], [1], [0, 0, 1, 1], [], []>} : vector<8x16xbf16>, vector<16x128xbf16>, vector<8x128xf32> -> vector<8x128xf32>
    %5 = vector.broadcast %3 : vector<1x128xf32> to vector<8x128xf32>
    %6 = arith.addf %4, %5 : vector<8x128xf32>
    %cst_6 = arith.constant dense<0.000000e+00> : vector<8x128xf32>
    %7 = tpu.matmul %1, %2, %cst_6 {dimension_numbers = #tpu.dot_dimension_numbers<[1], [0], [0], [1], [0, 0, 1, 1], [], []>} : vector<8x16xbf16>, vector<16x128xbf16>, vector<8x128xf32> -> vector<8x128xf32>
    %8 = vector.broadcast %3 : vector<1x128xf32> to vector<8x128xf32>
    %9 = arith.addf %7, %8 : vector<8x128xf32>
    %cst_7 = arith.constant 0.000000e+00 : f32
    %10 = vector.broadcast %cst_7 : f32 to vector<8x128xf32>
    %11 = arith.maximumf %6, %10 : vector<8x128xf32>
    %12 = arith.truncf %11 : vector<8x128xf32> to vector<8x128xbf16>
    %cst_8 = arith.constant 0.000000e+00 : f32
    %13 = vector.broadcast %cst_8 : f32 to vector<8x128xf32>
    %14 = arith.maximumf %9, %13 : vector<8x128xf32>
    %15 = arith.truncf %14 : vector<8x128xf32> to vector<8x128xbf16>
    %c0_9 = arith.constant 0 : index
    %c0_10 = arith.constant 0 : index
    %16 = vector.load %arg4[%c0_9, %c0_10] : memref<128x128xbf16, #tpu.memory_space<vmem>>, vector<128x128xbf16>
    %c0_11 = arith.constant 0 : index
    %c0_12 = arith.constant 0 : index
    %17 = vector.load %arg5[%c0_11, %c0_12] : memref<1x128xf32, #tpu.memory_space<vmem>>, vector<1x128xf32>
    %cst_13 = arith.constant dense<0.000000e+00> : vector<8x128xf32>
    %18 = tpu.matmul %12, %16, %cst_13 {dimension_numbers = #tpu.dot_dimension_numbers<[1], [0], [0], [1], [0, 0, 1, 1], [], []>} : vector<8x128xbf16>, vector<128x128xbf16>, vector<8x128xf32> -> vector<8x128xf32>
    %19 = vector.broadcast %17 : vector<1x128xf32> to vector<8x128xf32>
    %20 = arith.addf %18, %19 : vector<8x128xf32>
    %cst_14 = arith.constant dense<0.000000e+00> : vector<8x128xf32>
    %21 = tpu.matmul %15, %16, %cst_14 {dimension_numbers = #tpu.dot_dimension_numbers<[1], [0], [0], [1], [0, 0, 1, 1], [], []>} : vector<8x128xbf16>, vector<128x128xbf16>, vector<8x128xf32> -> vector<8x128xf32>
    %22 = vector.broadcast %17 : vector<1x128xf32> to vector<8x128xf32>
    %23 = arith.addf %21, %22 : vector<8x128xf32>
    %cst_15 = arith.constant 0.000000e+00 : f32
    %24 = vector.broadcast %cst_15 : f32 to vector<8x128xf32>
    %25 = arith.maximumf %20, %24 : vector<8x128xf32>
    %26 = arith.truncf %25 : vector<8x128xf32> to vector<8x128xbf16>
    %cst_16 = arith.constant 0.000000e+00 : f32
    %27 = vector.broadcast %cst_16 : f32 to vector<8x128xf32>
    %28 = arith.maximumf %23, %27 : vector<8x128xf32>
    %29 = arith.truncf %28 : vector<8x128xf32> to vector<8x128xbf16>
    %c0_17 = arith.constant 0 : index
    %c0_18 = arith.constant 0 : index
    %30 = vector.load %arg6[%c0_17, %c0_18] : memref<128x128xbf16, #tpu.memory_space<vmem>>, vector<128x128xbf16>
    %c0_19 = arith.constant 0 : index
    %c0_20 = arith.constant 0 : index
    %31 = vector.load %arg7[%c0_19, %c0_20] : memref<1x128xf32, #tpu.memory_space<vmem>>, vector<1x128xf32>
    %cst_21 = arith.constant dense<0.000000e+00> : vector<8x128xf32>
    %32 = tpu.matmul %26, %30, %cst_21 {dimension_numbers = #tpu.dot_dimension_numbers<[1], [0], [0], [1], [0, 0, 1, 1], [], []>} : vector<8x128xbf16>, vector<128x128xbf16>, vector<8x128xf32> -> vector<8x128xf32>
    %33 = vector.broadcast %31 : vector<1x128xf32> to vector<8x128xf32>
    %34 = arith.addf %32, %33 : vector<8x128xf32>
    %cst_22 = arith.constant dense<0.000000e+00> : vector<8x128xf32>
    %35 = tpu.matmul %29, %30, %cst_22 {dimension_numbers = #tpu.dot_dimension_numbers<[1], [0], [0], [1], [0, 0, 1, 1], [], []>} : vector<8x128xbf16>, vector<128x128xbf16>, vector<8x128xf32> -> vector<8x128xf32>
    %36 = vector.broadcast %31 : vector<1x128xf32> to vector<8x128xf32>
    %37 = arith.addf %35, %36 : vector<8x128xf32>
    %cst_23 = arith.constant 0.000000e+00 : f32
    %38 = vector.broadcast %cst_23 : f32 to vector<8x128xf32>
    %39 = arith.maximumf %34, %38 : vector<8x128xf32>
    %40 = arith.truncf %39 : vector<8x128xf32> to vector<8x128xbf16>
    %cst_24 = arith.constant 0.000000e+00 : f32
    %41 = vector.broadcast %cst_24 : f32 to vector<8x128xf32>
    %42 = arith.maximumf %37, %41 : vector<8x128xf32>
    %43 = arith.truncf %42 : vector<8x128xf32> to vector<8x128xbf16>
    %c0_25 = arith.constant 0 : index
    %c0_26 = arith.constant 0 : index
    %44 = vector.load %arg8[%c0_25, %c0_26] : memref<128x128xbf16, #tpu.memory_space<vmem>>, vector<128x128xbf16>
    %c0_27 = arith.constant 0 : index
    %c0_28 = arith.constant 0 : index
    %45 = vector.load %arg9[%c0_27, %c0_28] : memref<1x128xf32, #tpu.memory_space<vmem>>, vector<1x128xf32>
    %cst_29 = arith.constant dense<0.000000e+00> : vector<8x128xf32>
    %46 = tpu.matmul %40, %44, %cst_29 {dimension_numbers = #tpu.dot_dimension_numbers<[1], [0], [0], [1], [0, 0, 1, 1], [], []>} : vector<8x128xbf16>, vector<128x128xbf16>, vector<8x128xf32> -> vector<8x128xf32>
    %47 = vector.broadcast %45 : vector<1x128xf32> to vector<8x128xf32>
    %48 = arith.addf %46, %47 : vector<8x128xf32>
    %cst_30 = arith.constant dense<0.000000e+00> : vector<8x128xf32>
    %49 = tpu.matmul %43, %44, %cst_30 {dimension_numbers = #tpu.dot_dimension_numbers<[1], [0], [0], [1], [0, 0, 1, 1], [], []>} : vector<8x128xbf16>, vector<128x128xbf16>, vector<8x128xf32> -> vector<8x128xf32>
    %50 = vector.broadcast %45 : vector<1x128xf32> to vector<8x128xf32>
    %51 = arith.addf %49, %50 : vector<8x128xf32>
    %cst_31 = arith.constant 0.000000e+00 : f32
    %52 = vector.broadcast %cst_31 : f32 to vector<8x128xf32>
    %53 = arith.maximumf %48, %52 : vector<8x128xf32>
    %54 = arith.truncf %53 : vector<8x128xf32> to vector<8x128xbf16>
    %cst_32 = arith.constant 0.000000e+00 : f32
    %55 = vector.broadcast %cst_32 : f32 to vector<8x128xf32>
    %56 = arith.maximumf %51, %55 : vector<8x128xf32>
    %57 = arith.truncf %56 : vector<8x128xf32> to vector<8x128xbf16>
    %c0_33 = arith.constant 0 : index
    %c0_34 = arith.constant 0 : index
    %58 = vector.load %arg10[%c0_33, %c0_34] : memref<128x128xbf16, #tpu.memory_space<vmem>>, vector<128x128xbf16>
    %c0_35 = arith.constant 0 : index
    %c0_36 = arith.constant 0 : index
    %59 = vector.load %arg11[%c0_35, %c0_36] : memref<1x128xf32, #tpu.memory_space<vmem>>, vector<1x128xf32>
    %cst_37 = arith.constant dense<0.000000e+00> : vector<8x128xf32>
    %60 = tpu.matmul %54, %58, %cst_37 {dimension_numbers = #tpu.dot_dimension_numbers<[1], [0], [0], [1], [0, 0, 1, 1], [], []>} : vector<8x128xbf16>, vector<128x128xbf16>, vector<8x128xf32> -> vector<8x128xf32>
    %61 = vector.broadcast %59 : vector<1x128xf32> to vector<8x128xf32>
    %62 = arith.addf %60, %61 : vector<8x128xf32>
    %cst_38 = arith.constant dense<0.000000e+00> : vector<8x128xf32>
    %63 = tpu.matmul %57, %58, %cst_38 {dimension_numbers = #tpu.dot_dimension_numbers<[1], [0], [0], [1], [0, 0, 1, 1], [], []>} : vector<8x128xbf16>, vector<128x128xbf16>, vector<8x128xf32> -> vector<8x128xf32>
    %64 = vector.broadcast %59 : vector<1x128xf32> to vector<8x128xf32>
    %65 = arith.addf %63, %64 : vector<8x128xf32>
    %c0_39 = arith.constant 0 : index
    %c0_40 = arith.constant 0 : index
    %66 = vector.load %arg12[%c0_39, %c0_40] : memref<16x128xf32, #tpu.memory_space<vmem>>, vector<8x128xf32>
    tpu.vector_store %arg12[%c0_39, %c0_40], %62 {strides = array<i32>} : memref<16x128xf32, #tpu.memory_space<vmem>>, vector<8x128xf32>,
    %c8_41 = arith.constant 8 : index
    %c0_42 = arith.constant 0 : index
    %67 = vector.load %arg12[%c8_41, %c0_42] : memref<16x128xf32, #tpu.memory_space<vmem>>, vector<8x128xf32>
    tpu.vector_store %arg12[%c8_41, %c0_42], %65 {strides = array<i32>} : memref<16x128xf32, #tpu.memory_space<vmem>>, vector<8x128xf32>,
    return
  }
  func.func @transform_0(%arg0: i32) -> (i32, i32) {
    %c0_i32 = arith.constant 0 : i32
    %c0_i32_0 = arith.constant 0 : i32
    return %arg0, %c0_i32 : i32, i32
  }
  func.func @transform_1(%arg0: i32) -> (i32, i32) {
    %c0_i32 = arith.constant 0 : i32
    %c0_i32_0 = arith.constant 0 : i32
    %c0_i32_1 = arith.constant 0 : i32
    return %c0_i32, %c0_i32_0 : i32, i32
  }
  func.func @transform_2(%arg0: i32) -> (i32, i32) {
    %c0_i32 = arith.constant 0 : i32
    %c0_i32_0 = arith.constant 0 : i32
    %c0_i32_1 = arith.constant 0 : i32
    return %c0_i32, %c0_i32_0 : i32, i32
  }
  func.func @transform_3(%arg0: i32) -> (i32, i32) {
    %c0_i32 = arith.constant 0 : i32
    %c0_i32_0 = arith.constant 0 : i32
    %c0_i32_1 = arith.constant 0 : i32
    return %c0_i32, %c0_i32_0 : i32, i32
  }
  func.func @transform_4(%arg0: i32) -> (i32, i32) {
    %c0_i32 = arith.constant 0 : i32
    %c0_i32_0 = arith.constant 0 : i32
    %c0_i32_1 = arith.constant 0 : i32
    return %c0_i32, %c0_i32_0 : i32, i32
  }
  func.func @transform_5(%arg0: i32) -> (i32, i32) {
    %c0_i32 = arith.constant 0 : i32
    %c0_i32_0 = arith.constant 0 : i32
    %c0_i32_1 = arith.constant 0 : i32
    return %c0_i32, %c0_i32_0 : i32, i32
  }
  func.func @transform_6(%arg0: i32) -> (i32, i32) {
    %c0_i32 = arith.constant 0 : i32
    %c0_i32_0 = arith.constant 0 : i32
    %c0_i32_1 = arith.constant 0 : i32
    return %c0_i32, %c0_i32_0 : i32, i32
  }
  func.func @transform_7(%arg0: i32) -> (i32, i32) {
    %c0_i32 = arith.constant 0 : i32
    %c0_i32_0 = arith.constant 0 : i32
    %c0_i32_1 = arith.constant 0 : i32
    return %c0_i32, %c0_i32_0 : i32, i32
  }
  func.func @transform_8(%arg0: i32) -> (i32, i32) {
    %c0_i32 = arith.constant 0 : i32
    %c0_i32_0 = arith.constant 0 : i32
    %c0_i32_1 = arith.constant 0 : i32
    return %c0_i32, %c0_i32_0 : i32, i32
  }
  func.func @transform_9(%arg0: i32) -> (i32, i32) {
    %c0_i32 = arith.constant 0 : i32
    %c0_i32_0 = arith.constant 0 : i32
    %c0_i32_1 = arith.constant 0 : i32
    return %c0_i32, %c0_i32_0 : i32, i32
  }
  func.func @transform_10(%arg0: i32) -> (i32, i32) {
    %c0_i32 = arith.constant 0 : i32
    %c0_i32_0 = arith.constant 0 : i32
    %c0_i32_1 = arith.constant 0 : i32
    return %c0_i32, %c0_i32_0 : i32, i32
  }
  func.func @transform_11(%arg0: i32) -> (i32, i32) {
    %c0_i32 = arith.constant 0 : i32
    %c0_i32_0 = arith.constant 0 : i32
    return %arg0, %c0_i32 : i32, i32
  }
}

</mosaic_0001>

<llo_original>
// kernel: tpu_custom_call.1
$region0: #{tpu_custom_call.1}
  #allocation0 [shape = 'u32[]', space=smem, size = 0x4, offset = 0x4, fixed_abs, tag = 'smem constant byte address 0x4 - core index']
  #allocation1 [shape = 'u32[144,128]{1,0:T(1,128)}', space=vmem, size = 0x12000, scoped, tag = 'internal scratch']
  %s0 = inlined_call_operand.hbm [shape: bf16[16,16], index: 0, kind: input, shape index: {}]
  %s1 = inlined_call_operand.hbm [shape: bf16[16,128], index: 1, kind: input, shape index: {}]
  %s2 = inlined_call_operand.vmem [shape: f32[1,128], index: 2, kind: input, shape index: {}]
  %s3 = inlined_call_operand.hbm [shape: bf16[128,128], index: 3, kind: input, shape index: {}]
  %s4 = inlined_call_operand.vmem [shape: f32[1,128], index: 4, kind: input, shape index: {}]
  %s5 = inlined_call_operand.hbm [shape: bf16[128,128], index: 5, kind: input, shape index: {}]
  %s6 = inlined_call_operand.vmem [shape: f32[1,128], index: 6, kind: input, shape index: {}]
  %s7 = inlined_call_operand.hbm [shape: bf16[128,128], index: 7, kind: input, shape index: {}]
  %s8 = inlined_call_operand.vmem [shape: f32[1,128], index: 8, kind: input, shape index: {}]
  %s9 = inlined_call_operand.hbm [shape: bf16[128,128], index: 9, kind: input, shape index: {}]
  %s10 = inlined_call_operand.vmem [shape: f32[1,128], index: 10, kind: input, shape index: {}]
  %s11 = inlined_call_operand.hbm [shape: f32[16,128], index: 11, kind: output, shape index: {}]
  %s12 = sld [smem:[#allocation0]]
  $region78: #{tpu_custom_call.1} parent=0
    _
  %s14 = ssub.s32 1, %s12
  %s15 = scalar_select 0, %s14, %s12
  $region1: #{tpu_custom_call.1} parent=0
    #allocation2 [shape = 'u8[4096]{0}', space=vmem, size = 0x1000, scoped, tag = 'input window, operand 0, single buffered']
    #allocation3 [shape = 's32[1]{0}', space=sflag, size = 0x4, scoped, tag = 'scoped memory for tpu_custom_call.1']
    #allocation4 [shape = 's32[1]{0}', space=sflag, size = 0x4, scoped, tag = 'scoped memory for tpu_custom_call.1']
    #allocation5 [shape = 'u8[4096]{0}', space=vmem, size = 0x1000, scoped, tag = 'input window, operand 1, single buffered']
    #allocation6 [shape = 's32[1]{0}', space=sflag, size = 0x4, scoped, tag = 'scoped memory for tpu_custom_call.1']
    #allocation7 [shape = 'u8[32768]{0}', space=vmem, size = 0x8000, scoped, tag = 'input window, operand 3, single buffered']
    #allocation8 [shape = 'u8[32768]{0}', space=vmem, size = 0x8000, scoped, tag = 'input window, operand 5, single buffered']
    #allocation9 [shape = 's32[1]{0}', space=sflag, size = 0x4, scoped, tag = 'scoped memory for tpu_custom_call.1']
    #allocation10 [shape = 'u8[32768]{0}', space=vmem, size = 0x8000, scoped, tag = 'input window, operand 7, single buffered']
    #allocation11 [shape = 'u8[32768]{0}', space=vmem, size = 0x8000, scoped, tag = 'input window, operand 9, single buffered']
    #allocation12 [shape = 's32[1]{0}', space=sflag, size = 0x4, scoped, tag = 'scoped memory for tpu_custom_call.1']
    #allocation13 [shape = 'u8[8192]{0}', space=vmem, size = 0x2000, scoped, tag = 'output window, operand 0, single buffered']
    %16 = vsyncpa [#allocation3], 0
    %17 = vsyncpa [#allocation6], 0
    %18 = vsyncpa [#allocation9], 0
    %19 = vsyncpa [#allocation12], 0
    %20 = vsyncpa [#allocation4], 0
    // Predicated region
    $region2: #{tpu_custom_call.1} parent=1 // pred_check
      _
    $region3: #{tpu_custom_call.1} parent=1 // pred_check_branch
      %22 = sbr.rel (0) target = $region5
    $region4: #{tpu_custom_call.1} parent=1 // pred_region
      %s24 = ssub.s32 128, 128
      %25 = vsyncadd [#allocation3], %s24
      %s26 = sshll.u32 [#allocation2], 4
      %s27 = int_to_ptr.vmem [resolvable:$true] %s26
      %32 = dma.hbm_to_vmem [thread:$0]  %s0, 128, %s27, [#allocation3], 64, 64, 4
    $region5: #{tpu_custom_call.1} parent=1 // pred_fallthru
      _
    // Predicated region
    $region6: #{tpu_custom_call.1} parent=1 // pred_check
      _
    $region7: #{tpu_custom_call.1} parent=1 // pred_check_branch
      %34 = sbr.rel (0) target = $region9
    $region8: #{tpu_custom_call.1} parent=1 // pred_region
      %s36 = ssub.s32 128, 128
      %37 = vsyncadd [#allocation6], %s36
      %s38 = sshll.u32 [#allocation5], 4
      %s39 = int_to_ptr.vmem [resolvable:$true] %s38
      %44 = dma.hbm_to_vmem [thread:$0]  %s1, 128, %s39, [#allocation6], 64, 64, 4
    $region9: #{tpu_custom_call.1} parent=1 // pred_fallthru
      _
    // Predicated region
    $region10: #{tpu_custom_call.1} parent=1 // pred_check
      _
    $region11: #{tpu_custom_call.1} parent=1 // pred_check_branch
      %46 = sbr.rel (0) target = $region13
    $region12: #{tpu_custom_call.1} parent=1 // pred_region
      _
    $region13: #{tpu_custom_call.1} parent=1 // pred_fallthru
      _
    // Predicated region
    $region14: #{tpu_custom_call.1} parent=1 // pred_check
      _
    $region15: #{tpu_custom_call.1} parent=1 // pred_check_branch
      %48 = sbr.rel (0) target = $region17
    $region16: #{tpu_custom_call.1} parent=1 // pred_region
      %s50 = ssub.s32 1024, 1024
      %51 = vsyncadd [#allocation6], %s50
      %s52 = sshll.u32 [#allocation7], 4
      %s53 = int_to_ptr.vmem [resolvable:$true] %s52
      %58 = dma.hbm_to_vmem [thread:$0]  %s3, 1024, %s53, [#allocation6], 64, 64, 4
    $region17: #{tpu_custom_call.1} parent=1 // pred_fallthru
      _
    // Predicated region
    $region18: #{tpu_custom_call.1} parent=1 // pred_check
      _
    $region19: #{tpu_custom_call.1} parent=1 // pred_check_branch
      %60 = sbr.rel (0) target = $region21
    $region20: #{tpu_custom_call.1} parent=1 // pred_region
      _
    $region21: #{tpu_custom_call.1} parent=1 // pred_fallthru
      _
    // Predicated region
    $region22: #{tpu_custom_call.1} parent=1 // pred_check
      _
    $region23: #{tpu_custom_call.1} parent=1 // pred_check_branch
      %62 = sbr.rel (0) target = $region25
    $region24: #{tpu_custom_call.1} parent=1 // pred_region
      %s64 = ssub.s32 1024, 1024
      %65 = vsyncadd [#allocation9], %s64
      %s66 = sshll.u32 [#allocation8], 4
      %s67 = int_to_ptr.vmem [resolvable:$true] %s66
      %72 = dma.hbm_to_vmem [thread:$0]  %s5, 1024, %s67, [#allocation9], 64, 64, 4
    $region25: #{tpu_custom_call.1} parent=1 // pred_fallthru
      _
    // Predicated region
    $region26: #{tpu_custom_call.1} parent=1 // pred_check
      _
    $region27: #{tpu_custom_call.1} parent=1 // pred_check_branch
      %74 = sbr.rel (0) target = $region29
    $region28: #{tpu_custom_call.1} parent=1 // pred_region
      _
    $region29: #{tpu_custom_call.1} parent=1 // pred_fallthru
      _
    // Predicated region
    $region30: #{tpu_custom_call.1} parent=1 // pred_check
      _
    $region31: #{tpu_custom_call.1} parent=1 // pred_check_branch
      %76 = sbr.rel (0) target = $region33
    $region32: #{tpu_custom_call.1} parent=1 // pred_region
      %s78 = ssub.s32 1024, 1024
      %79 = vsyncadd [#allocation9], %s78
      %s80 = sshll.u32 [#allocation10], 4
      %s81 = int_to_ptr.vmem [resolvable:$true] %s80
      %86 = dma.hbm_to_vmem [thread:$0]  %s7, 1024, %s81, [#allocation9], 64, 64, 4
    $region33: #{tpu_custom_call.1} parent=1 // pred_fallthru
      _
    // Predicated region
    $region34: #{tpu_custom_call.1} parent=1 // pred_check
      _
    $region35: #{tpu_custom_call.1} parent=1 // pred_check_branch
      %88 = sbr.rel (0) target = $region37
    $region36: #{tpu_custom_call.1} parent=1 // pred_region
      _
    $region37: #{tpu_custom_call.1} parent=1 // pred_fallthru
      _
    // Predicated region
    $region38: #{tpu_custom_call.1} parent=1 // pred_check
      _
    $region39: #{tpu_custom_call.1} parent=1 // pred_check_branch
      %90 = sbr.rel (0) target = $region41
    $region40: #{tpu_custom_call.1} parent=1 // pred_region
      %s92 = ssub.s32 1024, 1024
      %93 = vsyncadd [#allocation12], %s92
      %s94 = sshll.u32 [#allocation11], 4
      %s95 = int_to_ptr.vmem [resolvable:$true] %s94
      %100 = dma.hbm_to_vmem [thread:$0]  %s9, 1024, %s95, [#allocation12], 64, 64, 4
    $region41: #{tpu_custom_call.1} parent=1 // pred_fallthru
      _
    // Predicated region
    $region42: #{tpu_custom_call.1} parent=1 // pred_check
      _
    $region43: #{tpu_custom_call.1} parent=1 // pred_check_branch
      %102 = sbr.rel (0) target = $region45
    $region44: #{tpu_custom_call.1} parent=1 // pred_region
      _
    $region45: #{tpu_custom_call.1} parent=1 // pred_fallthru
      _
    // Predicated region
    $region46: #{tpu_custom_call.1} parent=1 // pred_check
      _
    $region47: #{tpu_custom_call.1} parent=1 // pred_check_branch
      %104 = sbr.rel (0) target = $region49
    $region48: #{tpu_custom_call.1} parent=1 // pred_region
      %105 = dma.done [#allocation3], 128
    $region49: #{tpu_custom_call.1} parent=1 // pred_fallthru
      _
    // Predicated region
    $region50: #{tpu_custom_call.1} parent=1 // pred_check
      _
    $region51: #{tpu_custom_call.1} parent=1 // pred_check_branch
      %107 = sbr.rel (0) target = $region53
    $region52: #{tpu_custom_call.1} parent=1 // pred_region
      %108 = dma.done [#allocation6], 128
    $region53: #{tpu_custom_call.1} parent=1 // pred_fallthru
      _
    // Predicated region
    $region54: #{tpu_custom_call.1} parent=1 // pred_check
      _
    $region55: #{tpu_custom_call.1} parent=1 // pred_check_branch
      %110 = sbr.rel (0) target = $region57
    $region56: #{tpu_custom_call.1} parent=1 // pred_region
      %111 = dma.done [#allocation6], 1024
    $region57: #{tpu_custom_call.1} parent=1 // pred_fallthru
      _
    // Predicated region
    $region58: #{tpu_custom_call.1} parent=1 // pred_check
      _
    $region59: #{tpu_custom_call.1} parent=1 // pred_check_branch
      %113 = sbr.rel (0) target = $region61
    $region60: #{tpu_custom_call.1} parent=1 // pred_region
      %114 = dma.done [#allocation9], 1024
    $region61: #{tpu_custom_call.1} parent=1 // pred_fallthru
      _
    // Predicated region
    $region62: #{tpu_custom_call.1} parent=1 // pred_check
      _
    $region63: #{tpu_custom_call.1} parent=1 // pred_check_branch
      %116 = sbr.rel (0) target = $region65
    $region64: #{tpu_custom_call.1} parent=1 // pred_region
      %117 = dma.done [#allocation9], 1024
    $region65: #{tpu_custom_call.1} parent=1 // pred_fallthru
      _
    // Predicated region
    $region66: #{tpu_custom_call.1} parent=1 // pred_check
      _
    $region67: #{tpu_custom_call.1} parent=1 // pred_check_branch
      %119 = sbr.rel (0) target = $region69
    $region68: #{tpu_custom_call.1} parent=1 // pred_region
      %120 = dma.done [#allocation12], 1024
    $region69: #{tpu_custom_call.1} parent=1 // pred_fallthru
      _
    %v122 = vld [vmem:[#allocation2] sm:$0xf]
    %v123 = vld [vmem:[#allocation2 + $0x4] sm:$0xf]
    %v124 = vld [vmem:[#allocation5] sm:$0xf]
    %v125 = vld [vmem:[#allocation5 + $0x4] sm:$0xf]
    %v126 = vld [vmem:[%s2] sm:$0x1]
    %v128 = vlaneseq
    %v129 = vshrl.u32 %v128, 7
    %v130 = vsub.s32 0, %v129
    %v131 = vrot.slane %v126, %v130
    %v135 = vunpack.c.l.b16 %v124
    %v136 = vunpack.c.l.b16 %v125
    %v137 = vpack.c.b16 %v136, %v135
    %vm139 = vcmask 130048
    %v141 = vsel %vm139, %v122, 0
    %143 = vmatprep.subr.bf16.mxu0 0
    %144 = vmatpush1.bf16.msra.mxu0 0
    %145 = vmatprep.subr.bf16.mxu0 0
    %146 = vmatpush1.bf16.msra.mxu0 0
    %147 = vmatprep.subr.bf16.mxu0 0
    %148 = vmatpush1.bf16.msra.mxu0 0
    %149 = vmatprep.subr.bf16.mxu0 0
    %150 = vmatpush1.bf16.msra.mxu0 0
    %151 = vmatprep.subr.bf16.mxu0 0
    %152 = vmatpush1.bf16.msra.mxu0 0
    %153 = vmatprep.subr.bf16.mxu0 0
    %154 = vmatpush1.bf16.msra.mxu0 0
    %155 = vmatprep.subr.bf16.mxu0 0
    %156 = vmatpush1.bf16.msra.mxu0 0
    %157 = vmatprep.subr.bf16.mxu0 0
    %158 = vmatpush1.bf16.msra.mxu0 %v137
    %159 = vmatprep.subr.bf16.mxu0 0
    %160 = vmatpush2.bf16.msra.mxu0 0
    %161 = vmatprep.subr.bf16.mxu0 0
    %162 = vmatpush2.bf16.msra.mxu0 0
    %163 = vmatprep.subr.bf16.mxu0 0
    %164 = vmatpush2.bf16.msra.mxu0 0
    %165 = vmatprep.subr.bf16.mxu0 0
    %166 = vmatpush2.bf16.msra.mxu0 0
    %167 = vmatprep.subr.bf16.mxu0 0
    %168 = vmatpush2.bf16.msra.mxu0 0
    %169 = vmatprep.subr.bf16.mxu0 0
    %170 = vmatpush2.bf16.msra.mxu0 0
    %171 = vmatprep.subr.bf16.mxu0 0
    %172 = vmatpush2.bf16.msra.mxu0 0
    %173 = vmatprep.subr.bf16.mxu0 0
    %174 = vmatpush2.bf16.msra.mxu0 0
    %175 = vmatprep.mubr.bf16.mxu0 0
    %176 = vmatmul.mubr.bf16.gmra.mxu0 %v141
    %v177 = vpop.f32.mrf.mxu0
    %v178 = vadd.f32 %v131, %v177
    %v179 = vpop.f32.mrf.mxu0
    %v180 = vpop.f32.mrf.mxu0
    %v181 = vpop.f32.mrf.mxu0
    %182 = vdwg.mxu0
    %v184 = vsel %vm139, %v123, 0
    %186 = vmatprep.subr.bf16.mxu0 0
    %187 = vmatpush1.bf16.msra.mxu0 0
    %188 = vmatprep.subr.bf16.mxu0 0
    %189 = vmatpush1.bf16.msra.mxu0 0
    %190 = vmatprep.subr.bf16.mxu0 0
    %191 = vmatpush1.bf16.msra.mxu0 0
    %192 = vmatprep.subr.bf16.mxu0 0
    %193 = vmatpush1.bf16.msra.mxu0 0
    %194 = vmatprep.subr.bf16.mxu0 0
    %195 = vmatpush1.bf16.msra.mxu0 0
    %196 = vmatprep.subr.bf16.mxu0 0
    %197 = vmatpush1.bf16.msra.mxu0 0
    %198 = vmatprep.subr.bf16.mxu0 0
    %199 = vmatpush1.bf16.msra.mxu0 0
    %200 = vmatprep.subr.bf16.mxu0 0
    %201 = vmatpush1.bf16.msra.mxu0 %v137
    %202 = vmatprep.subr.bf16.mxu0 0
    %203 = vmatpush2.bf16.msra.mxu0 0
    %204 = vmatprep.subr.bf16.mxu0 0
    %205 = vmatpush2.bf16.msra.mxu0 0
    %206 = vmatprep.subr.bf16.mxu0 0
    %207 = vmatpush2.bf16.msra.mxu0 0
    %208 = vmatprep.subr.bf16.mxu0 0
    %209 = vmatpush2.bf16.msra.mxu0 0
    %210 = vmatprep.subr.bf16.mxu0 0
    %211 = vmatpush2.bf16.msra.mxu0 0
    %212 = vmatprep.subr.bf16.mxu0 0
    %213 = vmatpush2.bf16.msra.mxu0 0
    %214 = vmatprep.subr.bf16.mxu0 0
    %215 = vmatpush2.bf16.msra.mxu0 0
    %216 = vmatprep.subr.bf16.mxu0 0
    %217 = vmatpush2.bf16.msra.mxu0 0
    %218 = vmatprep.mubr.bf16.mxu0 0
    %219 = vmatmul.mubr.bf16.gmra.mxu0 %v184
    %v220 = vpop.f32.mrf.mxu0
    %v221 = vadd.f32 %v131, %v220
    %v222 = vpop.f32.mrf.mxu0
    %v223 = vpop.f32.mrf.mxu0
    %v224 = vpop.f32.mrf.mxu0
    %225 = vdwg.mxu0
    %v226 = vmax.f32 %v178, 0.0
    %v227 = vpack.c.bf16 %v226, %v226
    %v228 = vmax.f32 %v221, 0.0
    %v229 = vpack.c.bf16 %v228, %v228
    %v230 = vld [vmem:[#allocation7] sm:$0xf]
    %v231 = vld [vmem:[#allocation7 + $0x4] sm:$0xf]
    %v232 = vld [vmem:[#allocation7 + $0x8] sm:$0xf]
    %v233 = vld [vmem:[#allocation7 + $0xc] sm:$0xf]
    %v234 = vld [vmem:[#allocation7 + $0x10] sm:$0xf]
    %v235 = vld [vmem:[#allocation7 + $0x14] sm:$0xf]
    %v236 = vld [vmem:[#allocation7 + $0x18] sm:$0xf]
    %v237 = vld [vmem:[#allocation7 + $0x1c] sm:$0xf]
    %v238 = vld [vmem:[#allocation7 + $0x20] sm:$0xf]
    %v239 = vld [vmem:[#allocation7 + $0x24] sm:$0xf]
    %v240 = vld [vmem:[#allocation7 + $0x28] sm:$0xf]
    %v241 = vld [vmem:[#allocation7 + $0x2c] sm:$0xf]
    %v242 = vld [vmem:[#allocation7 + $0x30] sm:$0xf]
    %v243 = vld [vmem:[#allocation7 + $0x34] sm:$0xf]
    %v244 = vld [vmem:[#allocation7 + $0x38] sm:$0xf]
    %v245 = vld [vmem:[#allocation7 + $0x3c] sm:$0xf]
    %v246 = vld [vmem:[%s4] sm:$0x1]
    %v248 = vlaneseq
    %v249 = vshrl.u32 %v248, 7
    %v250 = vsub.s32 0, %v249
    %v251 = vrot.slane %v246, %v250
    %v269 = vunpack.c.l.b16 %v230
    %v270 = vunpack.c.l.b16 %v231
    %v271 = vunpack.c.l.b16 %v232
    %v272 = vunpack.c.l.b16 %v233
    %v273 = vunpack.c.l.b16 %v234
    %v274 = vunpack.c.l.b16 %v235
    %v275 = vunpack.c.l.b16 %v236
    %v276 = vunpack.c.l.b16 %v237
    %v277 = vunpack.c.l.b16 %v238
    %v278 = vunpack.c.l.b16 %v239
    %v279 = vunpack.c.l.b16 %v240
    %v280 = vunpack.c.l.b16 %v241
    %v281 = vunpack.c.l.b16 %v242
    %v282 = vunpack.c.l.b16 %v243
    %v283 = vunpack.c.l.b16 %v244
    %v284 = vunpack.c.l.b16 %v245
    %v285 = vpack.c.b16 %v270, %v269
    %v286 = vpack.c.b16 %v272, %v271
    %v287 = vpack.c.b16 %v274, %v273
    %v288 = vpack.c.b16 %v276, %v275
    %v289 = vpack.c.b16 %v278, %v277
    %v290 = vpack.c.b16 %v280, %v279
    %v291 = vpack.c.b16 %v282, %v281
    %v292 = vpack.c.b16 %v284, %v283
    %301 = vmatprep.subr.bf16.mxu0 0
    %302 = vmatpush1.bf16.msra.mxu0 %v292
    %303 = vmatprep.subr.bf16.mxu0 0
    %304 = vmatpush1.bf16.msra.mxu0 %v291
    %305 = vmatprep.subr.bf16.mxu0 0
    %306 = vmatpush1.bf16.msra.mxu0 %v290
    %307 = vmatprep.subr.bf16.mxu0 0
    %308 = vmatpush1.bf16.msra.mxu0 %v289
    %309 = vmatprep.subr.bf16.mxu0 0
    %310 = vmatpush1.bf16.msra.mxu0 %v288
    %311 = vmatprep.subr.bf16.mxu0 0
    %312 = vmatpush1.bf16.msra.mxu0 %v287
    %313 = vmatprep.subr.bf16.mxu0 0
    %314 = vmatpush1.bf16.msra.mxu0 %v286
    %315 = vmatprep.subr.bf16.mxu0 0
    %316 = vmatpush1.bf16.msra.mxu0 %v285
    %317 = vmatprep.subr.bf16.mxu0 0
    %318 = vmatpush2.bf16.msra.mxu0 0
    %319 = vmatprep.subr.bf16.mxu0 0
    %320 = vmatpush2.bf16.msra.mxu0 0
    %321 = vmatprep.subr.bf16.mxu0 0
    %322 = vmatpush2.bf16.msra.mxu0 0
    %323 = vmatprep.subr.bf16.mxu0 0
    %324 = vmatpush2.bf16.msra.mxu0 0
    %325 = vmatprep.subr.bf16.mxu0 0
    %326 = vmatpush2.bf16.msra.mxu0 0
    %327 = vmatprep.subr.bf16.mxu0 0
    %328 = vmatpush2.bf16.msra.mxu0 0
    %329 = vmatprep.subr.bf16.mxu0 0
    %330 = vmatpush2.bf16.msra.mxu0 0
    %331 = vmatprep.subr.bf16.mxu0 0
    %332 = vmatpush2.bf16.msra.mxu0 0
    %333 = vmatprep.mubr.bf16.mxu0 0
    %334 = vmatmul.mubr.bf16.gmra.mxu0 %v227
    %v335 = vpop.f32.mrf.mxu0
    %v336 = vadd.f32 %v251, %v335
    %v337 = vpop.f32.mrf.mxu0
    %v338 = vpop.f32.mrf.mxu0
    %v339 = vpop.f32.mrf.mxu0
    %340 = vdwg.mxu0
    %341 = vmatprep.subr.bf16.mxu0 0
    %342 = vmatpush1.bf16.msra.mxu0 %v292
    %343 = vmatprep.subr.bf16.mxu0 0
    %344 = vmatpush1.bf16.msra.mxu0 %v291
    %345 = vmatprep.subr.bf16.mxu0 0
    %346 = vmatpush1.bf16.msra.mxu0 %v290
    %347 = vmatprep.subr.bf16.mxu0 0
    %348 = vmatpush1.bf16.msra.mxu0 %v289
    %349 = vmatprep.subr.bf16.mxu0 0
    %350 = vmatpush1.bf16.msra.mxu0 %v288
    %351 = vmatprep.subr.bf16.mxu0 0
    %352 = vmatpush1.bf16.msra.mxu0 %v287
    %353 = vmatprep.subr.bf16.mxu0 0
    %354 = vmatpush1.bf16.msra.mxu0 %v286
    %355 = vmatprep.subr.bf16.mxu0 0
    %356 = vmatpush1.bf16.msra.mxu0 %v285
    %357 = vmatprep.subr.bf16.mxu0 0
    %358 = vmatpush2.bf16.msra.mxu0 0
    %359 = vmatprep.subr.bf16.mxu0 0
    %360 = vmatpush2.bf16.msra.mxu0 0
    %361 = vmatprep.subr.bf16.mxu0 0
    %362 = vmatpush2.bf16.msra.mxu0 0
    %363 = vmatprep.subr.bf16.mxu0 0
    %364 = vmatpush2.bf16.msra.mxu0 0
    %365 = vmatprep.subr.bf16.mxu0 0
    %366 = vmatpush2.bf16.msra.mxu0 0
    %367 = vmatprep.subr.bf16.mxu0 0
    %368 = vmatpush2.bf16.msra.mxu0 0
    %369 = vmatprep.subr.bf16.mxu0 0
    %370 = vmatpush2.bf16.msra.mxu0 0
    %371 = vmatprep.subr.bf16.mxu0 0
    %372 = vmatpush2.bf16.msra.mxu0 0
    %373 = vmatprep.mubr.bf16.mxu0 0
    %374 = vmatmul.mubr.bf16.gmra.mxu0 %v229
    %v375 = vpop.f32.mrf.mxu0
    %v376 = vadd.f32 %v251, %v375
    %v377 = vpop.f32.mrf.mxu0
    %v378 = vpop.f32.mrf.mxu0
    %v379 = vpop.f32.mrf.mxu0
    %380 = vdwg.mxu0
    %v381 = vmax.f32 %v336, 0.0
    %v382 = vpack.c.bf16 %v381, %v381
    %v383 = vmax.f32 %v376, 0.0
    %v384 = vpack.c.bf16 %v383, %v383
    %v385 = vld [vmem:[#allocation8] sm:$0xf]
    %v386 = vld [vmem:[#allocation8 + $0x4] sm:$0xf]
    %v387 = vld [vmem:[#allocation8 + $0x8] sm:$0xf]
    %v388 = vld [vmem:[#allocation8 + $0xc] sm:$0xf]
    %v389 = vld [vmem:[#allocation8 + $0x10] sm:$0xf]
    %v390 = vld [vmem:[#allocation8 + $0x14] sm:$0xf]
    %v391 = vld [vmem:[#allocation8 + $0x18] sm:$0xf]
    %v392 = vld [vmem:[#allocation8 + $0x1c] sm:$0xf]
    %v393 = vld [vmem:[#allocation8 + $0x20] sm:$0xf]
    %v394 = vld [vmem:[#allocation8 + $0x24] sm:$0xf]
    %v395 = vld [vmem:[#allocation8 + $0x28] sm:$0xf]
    %v396 = vld [vmem:[#allocation8 + $0x2c] sm:$0xf]
    %v397 = vld [vmem:[#allocation8 + $0x30] sm:$0xf]
    %v398 = vld [vmem:[#allocation8 + $0x34] sm:$0xf]
    %v399 = vld [vmem:[#allocation8 + $0x38] sm:$0xf]
    %v400 = vld [vmem:[#allocation8 + $0x3c] sm:$0xf]
    %v401 = vld [vmem:[%s6] sm:$0x1]
    %v403 = vlaneseq
    %v404 = vshrl.u32 %v403, 7
    %v405 = vsub.s32 0, %v404
    %v406 = vrot.slane %v401, %v405
    %v424 = vunpack.c.l.b16 %v385
    %v425 = vunpack.c.l.b16 %v386
    %v426 = vunpack.c.l.b16 %v387
    %v427 = vunpack.c.l.b16 %v388
    %v428 = vunpack.c.l.b16 %v389
    %v429 = vunpack.c.l.b16 %v390
    %v430 = vunpack.c.l.b16 %v391
    %v431 = vunpack.c.l.b16 %v392
    %v432 = vunpack.c.l.b16 %v393
    %v433 = vunpack.c.l.b16 %v394
    %v434 = vunpack.c.l.b16 %v395
    %v435 = vunpack.c.l.b16 %v396
    %v436 = vunpack.c.l.b16 %v397
    %v437 = vunpack.c.l.b16 %v398
    %v438 = vunpack.c.l.b16 %v399
    %v439 = vunpack.c.l.b16 %v400
    %v440 = vpack.c.b16 %v425, %v424
    %v441 = vpack.c.b16 %v427, %v426
    %v442 = vpack.c.b16 %v429, %v428
    %v443 = vpack.c.b16 %v431, %v430
    %v444 = vpack.c.b16 %v433, %v432
    %v445 = vpack.c.b16 %v435, %v434
    %v446 = vpack.c.b16 %v437, %v436
    %v447 = vpack.c.b16 %v439, %v438
    %456 = vmatprep.subr.bf16.mxu0 0
    %457 = vmatpush1.bf16.msra.mxu0 %v447
    %458 = vmatprep.subr.bf16.mxu0 0
    %459 = vmatpush1.bf16.msra.mxu0 %v446
    %460 = vmatprep.subr.bf16.mxu0 0
    %461 = vmatpush1.bf16.msra.mxu0 %v445
    %462 = vmatprep.subr.bf16.mxu0 0
    %463 = vmatpush1.bf16.msra.mxu0 %v444
    %464 = vmatprep.subr.bf16.mxu0 0
    %465 = vmatpush1.bf16.msra.mxu0 %v443
    %466 = vmatprep.subr.bf16.mxu0 0
    %467 = vmatpush1.bf16.msra.mxu0 %v442
    %468 = vmatprep.subr.bf16.mxu0 0
    %469 = vmatpush1.bf16.msra.mxu0 %v441
    %470 = vmatprep.subr.bf16.mxu0 0
    %471 = vmatpush1.bf16.msra.mxu0 %v440
    %472 = vmatprep.subr.bf16.mxu0 0
    %473 = vmatpush2.bf16.msra.mxu0 0
    %474 = vmatprep.subr.bf16.mxu0 0
    %475 = vmatpush2.bf16.msra.mxu0 0
    %476 = vmatprep.subr.bf16.mxu0 0
    %477 = vmatpush2.bf16.msra.mxu0 0
    %478 = vmatprep.subr.bf16.mxu0 0
    %479 = vmatpush2.bf16.msra.mxu0 0
    %480 = vmatprep.subr.bf16.mxu0 0
    %481 = vmatpush2.bf16.msra.mxu0 0
    %482 = vmatprep.subr.bf16.mxu0 0
    %483 = vmatpush2.bf16.msra.mxu0 0
    %484 = vmatprep.subr.bf16.mxu0 0
    %485 = vmatpush2.bf16.msra.mxu0 0
    %486 = vmatprep.subr.bf16.mxu0 0
    %487 = vmatpush2.bf16.msra.mxu0 0
    %488 = vmatprep.mubr.bf16.mxu0 0
    %489 = vmatmul.mubr.bf16.gmra.mxu0 %v382
    %v490 = vpop.f32.mrf.mxu0
    %v491 = vadd.f32 %v406, %v490
    %v492 = vpop.f32.mrf.mxu0
    %v493 = vpop.f32.mrf.mxu0
    %v494 = vpop.f32.mrf.mxu0
    %495 = vdwg.mxu0
    %496 = vmatprep.subr.bf16.mxu0 0
    %497 = vmatpush1.bf16.msra.mxu0 %v447
    %498 = vmatprep.subr.bf16.mxu0 0
    %499 = vmatpush1.bf16.msra.mxu0 %v446
    %500 = vmatprep.subr.bf16.mxu0 0
    %501 = vmatpush1.bf16.msra.mxu0 %v445
    %502 = vmatprep.subr.bf16.mxu0 0
    %503 = vmatpush1.bf16.msra.mxu0 %v444
    %504 = vmatprep.subr.bf16.mxu0 0
    %505 = vmatpush1.bf16.msra.mxu0 %v443
    %506 = vmatprep.subr.bf16.mxu0 0
    %507 = vmatpush1.bf16.msra.mxu0 %v442
    %508 = vmatprep.subr.bf16.mxu0 0
    %509 = vmatpush1.bf16.msra.mxu0 %v441
    %510 = vmatprep.subr.bf16.mxu0 0
    %511 = vmatpush1.bf16.msra.mxu0 %v440
    %512 = vmatprep.subr.bf16.mxu0 0
    %513 = vmatpush2.bf16.msra.mxu0 0
    %514 = vmatprep.subr.bf16.mxu0 0
    %515 = vmatpush2.bf16.msra.mxu0 0
    %516 = vmatprep.subr.bf16.mxu0 0
    %517 = vmatpush2.bf16.msra.mxu0 0
    %518 = vmatprep.subr.bf16.mxu0 0
    %519 = vmatpush2.bf16.msra.mxu0 0
    %520 = vmatprep.subr.bf16.mxu0 0
    %521 = vmatpush2.bf16.msra.mxu0 0
    %522 = vmatprep.subr.bf16.mxu0 0
    %523 = vmatpush2.bf16.msra.mxu0 0
    %524 = vmatprep.subr.bf16.mxu0 0
    %525 = vmatpush2.bf16.msra.mxu0 0
    %526 = vmatprep.subr.bf16.mxu0 0
    %527 = vmatpush2.bf16.msra.mxu0 0
    %528 = vmatprep.mubr.bf16.mxu0 0
    %529 = vmatmul.mubr.bf16.gmra.mxu0 %v384
    %v530 = vpop.f32.mrf.mxu0
    %v531 = vadd.f32 %v406, %v530
    %v532 = vpop.f32.mrf.mxu0
    %v533 = vpop.f32.mrf.mxu0
    %v534 = vpop.f32.mrf.mxu0
    %535 = vdwg.mxu0
    %v536 = vmax.f32 %v491, 0.0
    %v537 = vpack.c.bf16 %v536, %v536
    %v538 = vmax.f32 %v531, 0.0
    %v539 = vpack.c.bf16 %v538, %v538
    %v540 = vld [vmem:[#allocation10] sm:$0xf]
    %v541 = vld [vmem:[#allocation10 + $0x4] sm:$0xf]
    %v542 = vld [vmem:[#allocation10 + $0x8] sm:$0xf]
    %v543 = vld [vmem:[#allocation10 + $0xc] sm:$0xf]
    %v544 = vld [vmem:[#allocation10 + $0x10] sm:$0xf]
    %v545 = vld [vmem:[#allocation10 + $0x14] sm:$0xf]
    %v546 = vld [vmem:[#allocation10 + $0x18] sm:$0xf]
    %v547 = vld [vmem:[#allocation10 + $0x1c] sm:$0xf]
    %v548 = vld [vmem:[#allocation10 + $0x20] sm:$0xf]
    %v549 = vld [vmem:[#allocation10 + $0x24] sm:$0xf]
    %v550 = vld [vmem:[#allocation10 + $0x28] sm:$0xf]
    %v551 = vld [vmem:[#allocation10 + $0x2c] sm:$0xf]
    %v552 = vld [vmem:[#allocation10 + $0x30] sm:$0xf]
    %v553 = vld [vmem:[#allocation10 + $0x34] sm:$0xf]
    %v554 = vld [vmem:[#allocation10 + $0x38] sm:$0xf]
    %v555 = vld [vmem:[#allocation10 + $0x3c] sm:$0xf]
    %v556 = vld [vmem:[%s8] sm:$0x1]
    %v558 = vlaneseq
    %v559 = vshrl.u32 %v558, 7
    %v560 = vsub.s32 0, %v559
    %v561 = vrot.slane %v556, %v560
    %v579 = vunpack.c.l.b16 %v540
    %v580 = vunpack.c.l.b16 %v541
    %v581 = vunpack.c.l.b16 %v542
    %v582 = vunpack.c.l.b16 %v543
    %v583 = vunpack.c.l.b16 %v544
    %v584 = vunpack.c.l.b16 %v545
    %v585 = vunpack.c.l.b16 %v546
    %v586 = vunpack.c.l.b16 %v547
    %v587 = vunpack.c.l.b16 %v548
    %v588 = vunpack.c.l.b16 %v549
    %v589 = vunpack.c.l.b16 %v550
    %v590 = vunpack.c.l.b16 %v551
    %v591 = vunpack.c.l.b16 %v552
    %v592 = vunpack.c.l.b16 %v553
    %v593 = vunpack.c.l.b16 %v554
    %v594 = vunpack.c.l.b16 %v555
    %v595 = vpack.c.b16 %v580, %v579
    %v596 = vpack.c.b16 %v582, %v581
    %v597 = vpack.c.b16 %v584, %v583
    %v598 = vpack.c.b16 %v586, %v585
    %v599 = vpack.c.b16 %v588, %v587
    %v600 = vpack.c.b16 %v590, %v589
    %v601 = vpack.c.b16 %v592, %v591
    %v602 = vpack.c.b16 %v594, %v593
    %611 = vmatprep.subr.bf16.mxu0 0
    %612 = vmatpush1.bf16.msra.mxu0 %v602
    %613 = vmatprep.subr.bf16.mxu0 0
    %614 = vmatpush1.bf16.msra.mxu0 %v601
    %615 = vmatprep.subr.bf16.mxu0 0
    %616 = vmatpush1.bf16.msra.mxu0 %v600
    %617 = vmatprep.subr.bf16.mxu0 0
    %618 = vmatpush1.bf16.msra.mxu0 %v599
    %619 = vmatprep.subr.bf16.mxu0 0
    %620 = vmatpush1.bf16.msra.mxu0 %v598
    %621 = vmatprep.subr.bf16.mxu0 0
    %622 = vmatpush1.bf16.msra.mxu0 %v597
    %623 = vmatprep.subr.bf16.mxu0 0
    %624 = vmatpush1.bf16.msra.mxu0 %v596
    %625 = vmatprep.subr.bf16.mxu0 0
    %626 = vmatpush1.bf16.msra.mxu0 %v595
    %627 = vmatprep.subr.bf16.mxu0 0
    %628 = vmatpush2.bf16.msra.mxu0 0
    %629 = vmatprep.subr.bf16.mxu0 0
    %630 = vmatpush2.bf16.msra.mxu0 0
    %631 = vmatprep.subr.bf16.mxu0 0
    %632 = vmatpush2.bf16.msra.mxu0 0
    %633 = vmatprep.subr.bf16.mxu0 0
    %634 = vmatpush2.bf16.msra.mxu0 0
    %635 = vmatprep.subr.bf16.mxu0 0
    %636 = vmatpush2.bf16.msra.mxu0 0
    %637 = vmatprep.subr.bf16.mxu0 0
    %638 = vmatpush2.bf16.msra.mxu0 0
    %639 = vmatprep.subr.bf16.mxu0 0
    %640 = vmatpush2.bf16.msra.mxu0 0
    %641 = vmatprep.subr.bf16.mxu0 0
    %642 = vmatpush2.bf16.msra.mxu0 0
    %643 = vmatprep.mubr.bf16.mxu0 0
    %644 = vmatmul.mubr.bf16.gmra.mxu0 %v537
    %v645 = vpop.f32.mrf.mxu0
    %v646 = vadd.f32 %v561, %v645
    %v647 = vpop.f32.mrf.mxu0
    %v648 = vpop.f32.mrf.mxu0
    %v649 = vpop.f32.mrf.mxu0
    %650 = vdwg.mxu0
    %651 = vmatprep.subr.bf16.mxu0 0
    %652 = vmatpush1.bf16.msra.mxu0 %v602
    %653 = vmatprep.subr.bf16.mxu0 0
    %654 = vmatpush1.bf16.msra.mxu0 %v601
    %655 = vmatprep.subr.bf16.mxu0 0
    %656 = vmatpush1.bf16.msra.mxu0 %v600
    %657 = vmatprep.subr.bf16.mxu0 0
    %658 = vmatpush1.bf16.msra.mxu0 %v599
    %659 = vmatprep.subr.bf16.mxu0 0
    %660 = vmatpush1.bf16.msra.mxu0 %v598
    %661 = vmatprep.subr.bf16.mxu0 0
    %662 = vmatpush1.bf16.msra.mxu0 %v597
    %663 = vmatprep.subr.bf16.mxu0 0
    %664 = vmatpush1.bf16.msra.mxu0 %v596
    %665 = vmatprep.subr.bf16.mxu0 0
    %666 = vmatpush1.bf16.msra.mxu0 %v595
    %667 = vmatprep.subr.bf16.mxu0 0
    %668 = vmatpush2.bf16.msra.mxu0 0
    %669 = vmatprep.subr.bf16.mxu0 0
    %670 = vmatpush2.bf16.msra.mxu0 0
    %671 = vmatprep.subr.bf16.mxu0 0
    %672 = vmatpush2.bf16.msra.mxu0 0
    %673 = vmatprep.subr.bf16.mxu0 0
    %674 = vmatpush2.bf16.msra.mxu0 0
    %675 = vmatprep.subr.bf16.mxu0 0
    %676 = vmatpush2.bf16.msra.mxu0 0
    %677 = vmatprep.subr.bf16.mxu0 0
    %678 = vmatpush2.bf16.msra.mxu0 0
    %679 = vmatprep.subr.bf16.mxu0 0
    %680 = vmatpush2.bf16.msra.mxu0 0
    %681 = vmatprep.subr.bf16.mxu0 0
    %682 = vmatpush2.bf16.msra.mxu0 0
    %683 = vmatprep.mubr.bf16.mxu0 0
    %684 = vmatmul.mubr.bf16.gmra.mxu0 %v539
    %v685 = vpop.f32.mrf.mxu0
    %v686 = vadd.f32 %v561, %v685
    %v687 = vpop.f32.mrf.mxu0
    %v688 = vpop.f32.mrf.mxu0
    %v689 = vpop.f32.mrf.mxu0
    %690 = vdwg.mxu0
    %v691 = vmax.f32 %v646, 0.0
    %v692 = vpack.c.bf16 %v691, %v691
    %v693 = vmax.f32 %v686, 0.0
    %v694 = vpack.c.bf16 %v693, %v693
    %v695 = vld [vmem:[#allocation11] sm:$0xf]
    %v696 = vld [vmem:[#allocation11 + $0x4] sm:$0xf]
    %v697 = vld [vmem:[#allocation11 + $0x8] sm:$0xf]
    %v698 = vld [vmem:[#allocation11 + $0xc] sm:$0xf]
    %v699 = vld [vmem:[#allocation11 + $0x10] sm:$0xf]
    %v700 = vld [vmem:[#allocation11 + $0x14] sm:$0xf]
    %v701 = vld [vmem:[#allocation11 + $0x18] sm:$0xf]
    %v702 = vld [vmem:[#allocation11 + $0x1c] sm:$0xf]
    %v703 = vld [vmem:[#allocation11 + $0x20] sm:$0xf]
    %v704 = vld [vmem:[#allocation11 + $0x24] sm:$0xf]
    %v705 = vld [vmem:[#allocation11 + $0x28] sm:$0xf]
    %v706 = vld [vmem:[#allocation11 + $0x2c] sm:$0xf]
    %v707 = vld [vmem:[#allocation11 + $0x30] sm:$0xf]
    %v708 = vld [vmem:[#allocation11 + $0x34] sm:$0xf]
    %v709 = vld [vmem:[#allocation11 + $0x38] sm:$0xf]
    %v710 = vld [vmem:[#allocation11 + $0x3c] sm:$0xf]
    %v711 = vld [vmem:[%s10] sm:$0x1]
    %v713 = vlaneseq
    %v714 = vshrl.u32 %v713, 7
    %v715 = vsub.s32 0, %v714
    %v716 = vrot.slane %v711, %v715
    %v734 = vunpack.c.l.b16 %v695
    %v735 = vunpack.c.l.b16 %v696
    %v736 = vunpack.c.l.b16 %v697
    %v737 = vunpack.c.l.b16 %v698
    %v738 = vunpack.c.l.b16 %v699
    %v739 = vunpack.c.l.b16 %v700
    %v740 = vunpack.c.l.b16 %v701
    %v741 = vunpack.c.l.b16 %v702
    %v742 = vunpack.c.l.b16 %v703
    %v743 = vunpack.c.l.b16 %v704
    %v744 = vunpack.c.l.b16 %v705
    %v745 = vunpack.c.l.b16 %v706
    %v746 = vunpack.c.l.b16 %v707
    %v747 = vunpack.c.l.b16 %v708
    %v748 = vunpack.c.l.b16 %v709
    %v749 = vunpack.c.l.b16 %v710
    %v750 = vpack.c.b16 %v735, %v734
    %v751 = vpack.c.b16 %v737, %v736
    %v752 = vpack.c.b16 %v739, %v738
    %v753 = vpack.c.b16 %v741, %v740
    %v754 = vpack.c.b16 %v743, %v742
    %v755 = vpack.c.b16 %v745, %v744
    %v756 = vpack.c.b16 %v747, %v746
    %v757 = vpack.c.b16 %v749, %v748
    %766 = vmatprep.subr.bf16.mxu0 0
    %767 = vmatpush1.bf16.msra.mxu0 %v757
    %768 = vmatprep.subr.bf16.mxu0 0
    %769 = vmatpush1.bf16.msra.mxu0 %v756
    %770 = vmatprep.subr.bf16.mxu0 0
    %771 = vmatpush1.bf16.msra.mxu0 %v755
    %772 = vmatprep.subr.bf16.mxu0 0
    %773 = vmatpush1.bf16.msra.mxu0 %v754
    %774 = vmatprep.subr.bf16.mxu0 0
    %775 = vmatpush1.bf16.msra.mxu0 %v753
    %776 = vmatprep.subr.bf16.mxu0 0
    %777 = vmatpush1.bf16.msra.mxu0 %v752
    %778 = vmatprep.subr.bf16.mxu0 0
    %779 = vmatpush1.bf16.msra.mxu0 %v751
    %780 = vmatprep.subr.bf16.mxu0 0
    %781 = vmatpush1.bf16.msra.mxu0 %v750
    %782 = vmatprep.subr.bf16.mxu0 0
    %783 = vmatpush2.bf16.msra.mxu0 0
    %784 = vmatprep.subr.bf16.mxu0 0
    %785 = vmatpush2.bf16.msra.mxu0 0
    %786 = vmatprep.subr.bf16.mxu0 0
    %787 = vmatpush2.bf16.msra.mxu0 0
    %788 = vmatprep.subr.bf16.mxu0 0
    %789 = vmatpush2.bf16.msra.mxu0 0
    %790 = vmatprep.subr.bf16.mxu0 0
    %791 = vmatpush2.bf16.msra.mxu0 0
    %792 = vmatprep.subr.bf16.mxu0 0
    %793 = vmatpush2.bf16.msra.mxu0 0
    %794 = vmatprep.subr.bf16.mxu0 0
    %795 = vmatpush2.bf16.msra.mxu0 0
    %796 = vmatprep.subr.bf16.mxu0 0
    %797 = vmatpush2.bf16.msra.mxu0 0
    %798 = vmatprep.mubr.bf16.mxu0 0
    %799 = vmatmul.mubr.bf16.gmra.mxu0 %v692
    %v800 = vpop.f32.mrf.mxu0
    %v801 = vadd.f32 %v716, %v800
    %v802 = vpop.f32.mrf.mxu0
    %v803 = vpop.f32.mrf.mxu0
    %v804 = vpop.f32.mrf.mxu0
    %805 = vdwg.mxu0
    %806 = vmatprep.subr.bf16.mxu0 0
    %807 = vmatpush1.bf16.msra.mxu0 %v757
    %808 = vmatprep.subr.bf16.mxu0 0
    %809 = vmatpush1.bf16.msra.mxu0 %v756
    %810 = vmatprep.subr.bf16.mxu0 0
    %811 = vmatpush1.bf16.msra.mxu0 %v755
    %812 = vmatprep.subr.bf16.mxu0 0
    %813 = vmatpush1.bf16.msra.mxu0 %v754
    %814 = vmatprep.subr.bf16.mxu0 0
    %815 = vmatpush1.bf16.msra.mxu0 %v753
    %816 = vmatprep.subr.bf16.mxu0 0
    %817 = vmatpush1.bf16.msra.mxu0 %v752
    %818 = vmatprep.subr.bf16.mxu0 0
    %819 = vmatpush1.bf16.msra.mxu0 %v751
    %820 = vmatprep.subr.bf16.mxu0 0
    %821 = vmatpush1.bf16.msra.mxu0 %v750
    %822 = vmatprep.subr.bf16.mxu0 0
    %823 = vmatpush2.bf16.msra.mxu0 0
    %824 = vmatprep.subr.bf16.mxu0 0
    %825 = vmatpush2.bf16.msra.mxu0 0
    %826 = vmatprep.subr.bf16.mxu0 0
    %827 = vmatpush2.bf16.msra.mxu0 0
    %828 = vmatprep.subr.bf16.mxu0 0
    %829 = vmatpush2.bf16.msra.mxu0 0
    %830 = vmatprep.subr.bf16.mxu0 0
    %831 = vmatpush2.bf16.msra.mxu0 0
    %832 = vmatprep.subr.bf16.mxu0 0
    %833 = vmatpush2.bf16.msra.mxu0 0
    %834 = vmatprep.subr.bf16.mxu0 0
    %835 = vmatpush2.bf16.msra.mxu0 0
    %836 = vmatprep.subr.bf16.mxu0 0
    %837 = vmatpush2.bf16.msra.mxu0 0
    %838 = vmatprep.mubr.bf16.mxu0 0
    %839 = vmatmul.mubr.bf16.gmra.mxu0 %v694
    %v840 = vpop.f32.mrf.mxu0
    %v841 = vadd.f32 %v716, %v840
    %v842 = vpop.f32.mrf.mxu0
    %v843 = vpop.f32.mrf.mxu0
    %v844 = vpop.f32.mrf.mxu0
    %845 = vdwg.mxu0
    %846 = vst [vmem:[#allocation13] sm:$0xff] %v801
    %847 = vst [vmem:[#allocation13 + $0x8] sm:$0xff] %v841
    // Predicated region
    $region70: #{tpu_custom_call.1} parent=1 // pred_check
      _
    $region71: #{tpu_custom_call.1} parent=1 // pred_check_branch
      %849 = sbr.rel (0) target = $region73
    $region72: #{tpu_custom_call.1} parent=1 // pred_region
      %s851 = ssub.s32 256, 256
      %852 = vsyncadd [#allocation4], %s851
      %s853 = sshll.u32 [#allocation13], 4
      %s854 = int_to_ptr.vmem [resolvable:$true] %s853
      %859 = dma.vmem_to_hbm [thread:$0]  %s854, 256, %s11, [#allocation4], 128, 128, 8
    $region73: #{tpu_custom_call.1} parent=1 // pred_fallthru
      _
    // Predicated region
    $region74: #{tpu_custom_call.1} parent=1 // pred_check
      _
    $region75: #{tpu_custom_call.1} parent=1 // pred_check_branch
      %861 = sbr.rel (0) target = $region77
    $region76: #{tpu_custom_call.1} parent=1 // pred_region
      %862 = dma.done [#allocation4], 256
    $region77: #{tpu_custom_call.1} parent=1 // pred_fallthru
      _
    %863 = vsyncpa [#allocation3], 1
    %864 = vsyncpa [#allocation6], 1
    %865 = vsyncpa [#allocation9], 1
    %866 = vsyncpa [#allocation12], 1
    %867 = vsyncpa [#allocation4], 1

</llo_original>
